<compile_context>
chip_gen: v5e
topology: v5e:2x2
jax: 0.10.0
libtpu: 0.0.40
codegen_flags: <defaults>
</compile_context>

<pallas_src>
import jax
import jax.numpy as jnp
from jax import lax
from jax.experimental import pallas as pl
from jax.experimental.pallas import tpu as pltpu

KSIZE = 3          # AdaptiveFM default kernel_size (kernel specialized to 3x3)
PAD = KSIZE // 2


def _adaptive_fm_kernel(wb_ref, x_ref, o_ref):
    # wb_ref: SMEM (C, 10) f32   per-channel [w00 w01 w02 w10 ... w22, bias]
    # x_ref : VMEM (1, 1, H, W)  one input channel plane (W on lanes, H on sublanes)
    # o_ref : VMEM (1, 1, H, W)  matching output plane
    c = pl.program_id(1)
    H, W = o_ref.shape[2], o_ref.shape[3]

    xv = x_ref[0, 0].astype(jnp.float32)              # single load + single cast

    # Tiny {0,1} boundary masks: one (1, W) column vector + one (H, 1) row
    # vector per step (negligible vs. full-plane iota/where).
    col = lax.broadcasted_iota(jnp.int32, (1, W), 1)
    row = lax.broadcasted_iota(jnp.int32, (H, 1), 0)
    mask_l = (col >= 1).astype(jnp.float32)           # zero x==0  column after left roll
    mask_r = (col <= W - 2).astype(jnp.float32)       # zero x==W-1 column after right roll
    mask_t = (row >= 1).astype(jnp.float32)           # zero y==0  row    after down shift
    mask_b = (row <= H - 2).astype(jnp.float32)       # zero y==H-1 row   after up shift

    # Horizontal neighbours: one XLU lane-rotate each, shared by all 3 tap rows.
    # (Positive shifts only; W-1 is the wrap-equivalent of -1.)
    left = pltpu.roll(xv, shift=1, axis=1)            # left[y, x]  = xv[y, x-1] (wraps at x==0)
    right = pltpu.roll(xv, shift=W - 1, axis=1)       # right[y, x] = xv[y, x+1] (wraps at x==W-1)

    def hcomb(ky):
        # 3-tap horizontal combination for stencil row `ky`; the column masks
        # are folded into the (1, W) tap rows, so boundary handling costs no
        # extra per-element ops.
        wl = wb_ref[c, ky * KSIZE + 0] * mask_l
        wm = wb_ref[c, ky * KSIZE + 1]
        wr = wb_ref[c, ky * KSIZE + 2] * mask_r
        return wl * left + wm * xv + wr * right

    bias = wb_ref[c, KSIZE * KSIZE]

    # out[y] = hcomb0[y-1] + hcomb1[y] + hcomb2[y+1] + bias + x[y]  (zeros out of range)
    acc = xv + bias + hcomb(1)
    acc = acc + pltpu.roll(hcomb(0), shift=1, axis=0) * mask_t       # row above (shift down)
    acc = acc + pltpu.roll(hcomb(2), shift=H - 1, axis=0) * mask_b   # row below (shift up)

    o_ref[0, 0] = acc.astype(o_ref.dtype)             # exactly one store pass


def _vmem_limit_bytes(H, W, in_itemsize, out_itemsize):
    """Per-step footprint with headroom: ~8 live f32 planes (xv / left / right /
    hcomb temps / acc) + double-buffered input and output blocks, capped at 90%
    of the physical VMEM of the current generation."""
    plane_f32 = H * W * 4
    need = 8 * plane_f32 + 2 * H * W * (in_itemsize + out_itemsize) + (2 << 20)
    try:
        phys = int(getattr(pltpu.get_tpu_info(), "vmem_capacity_bytes", 64 << 20))
    except Exception:
        phys = 64 << 20                                # conservative (v7x physical)
    cap = int(phys * 0.9)
    return int(min(max(need, 32 << 20), cap))


def adaptive_fm(x, weight, bias):
    """AdaptiveFM forward: depthwise 3x3 conv (groups=C, padding=1) + bias + x.

    x: (N, C, H, W) f32 or bf16; weight: (C, 1, 3, 3); bias: (C,).
    Output dtype follows x.dtype; accumulation is f32.
    """
    N, C, H, W = x.shape
    assert weight.shape == (C, 1, KSIZE, KSIZE), "kernel specialized to 3x3 depthwise taps"
    assert bias.shape == (C,)

    # Per-channel scalar table (9 taps + bias), f32, lives whole in SMEM.
    wb = jnp.concatenate(
        [weight.reshape(C, KSIZE * KSIZE).astype(jnp.float32),
         bias.reshape(C, 1).astype(jnp.float32)],
        axis=1)                                                        # (C, 10)

    itemsize = jnp.dtype(x.dtype).itemsize
    return pl.pallas_call(
        _adaptive_fm_kernel,
        out_shape=jax.ShapeDtypeStruct((N, C, H, W), x.dtype),
        grid=(N, C),
        in_specs=[
            pl.BlockSpec(memory_space=pltpu.MemorySpace.SMEM),          # (C, 10) scalar taps
            pl.BlockSpec((1, 1, H, W), lambda n, c: (n, c, 0, 0)),      # input channel plane
        ],
        out_specs=pl.BlockSpec((1, 1, H, W), lambda n, c: (n, c, 0, 0)),
        compiler_params=pltpu.CompilerParams(
            dimension_semantics=("parallel", "parallel"),
            vmem_limit_bytes=_vmem_limit_bytes(H, W, itemsize, itemsize),
        ),
        cost_estimate=pl.CostEstimate(
            flops=(2 * KSIZE * KSIZE + 4) * N * C * H * W,
            transcendentals=0,
            bytes_accessed=2 * N * C * H * W * itemsize + int(wb.size) * 4,
        ),
    )(wb, x)


def _reference(x, weight, bias):
    # Pure-JAX reference: depthwise conv (groups=C) + bias + residual, f32.
    C = x.shape[1]
    xf = x.astype(jnp.float32)
    y = lax.conv_general_dilated(
        xf, weight.astype(jnp.float32),
        window_strides=(1, 1),
        padding=((PAD, PAD), (PAD, PAD)),
        dimension_numbers=("NCHW", "OIHW", "NCHW"),
        feature_group_count=C,
    )
    return y + bias.astype(jnp.float32)[None, :, None, None] + xf


if __name__ == "__main__":
    key = jax.random.PRNGKey(0)
    k_x, k_w, k_b, k_x2 = jax.random.split(key, 4)

    # nn.Conv2d default init: U(+/- 1/sqrt(fan_in)), fan_in = 1*3*3 = 9.
    bound = 1.0 / (KSIZE * KSIZE) ** 0.5

    # --- primary test: module-default small shape --------------------------
    N, C, H, W = 2, 4, 16, 16
    x = jax.random.normal(k_x, (N, C, H, W), dtype=jnp.float32)
    weight = jax.random.uniform(k_w, (C, 1, KSIZE, KSIZE), jnp.float32,
                                minval=-bound, maxval=bound)
    bias = jax.random.uniform(k_b, (C,), jnp.float32, minval=-bound, maxval=bound)

    out = jax.block_until_ready(adaptive_fm(x, weight, bias))
    ref = _reference(x, weight, bias)
    assert out.shape == (N, C, H, W)
    assert jnp.allclose(out, ref, atol=1e-5, rtol=1e-5), "f32 mismatch vs reference"

    # --- non-(8,128)-aligned spatial dims, odd channel count ---------------
    N2, C2, H2, W2 = 1, 3, 13, 21
    x2 = jax.random.normal(k_x2, (N2, C2, H2, W2), dtype=jnp.float32)
    out2 = jax.block_until_ready(adaptive_fm(x2, weight[:C2], bias[:C2]))
    ref2 = _reference(x2, weight[:C2], bias[:C2])
    assert jnp.allclose(out2, ref2, atol=1e-5, rtol=1e-5), "odd-shape mismatch vs reference"

    # --- bf16 I/O (memory-bound v5e/v6e path); compute stays f32 -----------
    x_bf = x.astype(jnp.bfloat16)
    out_bf = jax.block_until_ready(adaptive_fm(x_bf, weight, bias))
    ref_bf = _reference(x_bf, weight, bias)
    assert out_bf.dtype == jnp.bfloat16
    assert jnp.allclose(out_bf.astype(jnp.float32), ref_bf, atol=5e-2, rtol=5e-2), \
        "bf16 mismatch vs reference"

    print("KERNEL_OK")
</pallas_src>

<mosaic_0001>
module attributes {stable_mosaic.version = 11 : i64} {
  func.func @_adaptive_fm_kernel(%arg0: i32, %arg1: i32, %arg2: memref<4x10xf32, #tpu.memory_space<smem>>, %arg3: memref<1x1x16x16xf32, #tpu.memory_space<vmem>>, %arg4: memref<1x1x16x16xf32, #tpu.memory_space<vmem>>) attributes {dimension_semantics = [#tpu.dimension_semantics<parallel>, #tpu.dimension_semantics<parallel>], iteration_bounds = array<i64: 2, 4>, scalar_prefetch = 0 : i64, scratch_operands = 0 : i64, tpu.core_type = #tpu.core_type<tc>, window_params = [{transform_indices = @transform_0, window_bounds = array<i64: 4, 10>}, {transform_indices = @transform_1, window_bounds = array<i64: 1, 1, 16, 16>}, {transform_indices = @transform_2, window_bounds = array<i64: 1, 1, 16, 16>}]} {
    %c0 = arith.constant 0 : index
    %c0_0 = arith.constant 0 : index
    %c0_1 = arith.constant 0 : index
    %c0_2 = arith.constant 0 : index
    %0 = vector.load %arg3[%c0, %c0_0, %c0_1, %c0_2] : memref<1x1x16x16xf32, #tpu.memory_space<vmem>>, vector<1x1x16x16xf32>
    %1 = vector.shape_cast %0 : vector<1x1x16x16xf32> to vector<16x16xf32>
    %2 = tpu.iota {dimensions = array<i32: 1>} : vector<1x16xi32>
    %3 = tpu.iota {dimensions = array<i32: 0>} : vector<16x1xi32>
    %c1_i32 = arith.constant 1 : i32
    %4 = vector.broadcast %c1_i32 : i32 to vector<1x16xi32>
    %5 = arith.cmpi sge, %2, %4 : vector<1x16xi32>
    %6 = arith.extui %5 : vector<1x16xi1> to vector<1x16xi32>
    %7 = arith.sitofp %6 : vector<1x16xi32> to vector<1x16xf32>
    %c14_i32 = arith.constant 14 : i32
    %8 = vector.broadcast %c14_i32 : i32 to vector<1x16xi32>
    %9 = arith.cmpi sle, %2, %8 : vector<1x16xi32>
    %10 = arith.extui %9 : vector<1x16xi1> to vector<1x16xi32>
    %11 = arith.sitofp %10 : vector<1x16xi32> to vector<1x16xf32>
    %c1_i32_3 = arith.constant 1 : i32
    %12 = vector.broadcast %c1_i32_3 : i32 to vector<16x1xi32>
    %13 = arith.cmpi sge, %3, %12 : vector<16x1xi32>
    %14 = arith.extui %13 : vector<16x1xi1> to vector<16x1xi32>
    %15 = arith.sitofp %14 : vector<16x1xi32> to vector<16x1xf32>
    %c14_i32_4 = arith.constant 14 : i32
    %16 = vector.broadcast %c14_i32_4 : i32 to vector<16x1xi32>
    %17 = arith.cmpi sle, %3, %16 : vector<16x1xi32>
    %18 = arith.extui %17 : vector<16x1xi1> to vector<16x1xi32>
    %19 = arith.sitofp %18 : vector<16x1xi32> to vector<16x1xf32>
    %c1_i32_5 = arith.constant 1 : i32
    %20 = tpu.dynamic_rotate %1 by %c1_i32_5 dim 1 : vector<16x16xf32>, i32 -> vector<16x16xf32>
    %c15_i32 = arith.constant 15 : i32
    %21 = tpu.dynamic_rotate %1 by %c15_i32 dim 1 : vector<16x16xf32>, i32 -> vector<16x16xf32>
    %22 = arith.index_cast %arg1 : i32 to index
    %c9 = arith.constant 9 : index
    %23 = memref.load %arg2[%22, %c9] : memref<4x10xf32, #tpu.memory_space<smem>>
    %24 = vector.broadcast %23 : f32 to vector<16x16xf32>
    %25 = arith.addf %1, %24 : vector<16x16xf32>
    %26 = arith.index_cast %arg1 : i32 to index
    %c3 = arith.constant 3 : index
    %27 = memref.load %arg2[%26, %c3] : memref<4x10xf32, #tpu.memory_space<smem>>
    %28 = vector.broadcast %27 : f32 to vector<1x16xf32>
    %29 = arith.mulf %28, %7 : vector<1x16xf32>
    %30 = arith.index_cast %arg1 : i32 to index
    %c4 = arith.constant 4 : index
    %31 = memref.load %arg2[%30, %c4] : memref<4x10xf32, #tpu.memory_space<smem>>
    %32 = arith.index_cast %arg1 : i32 to index
    %c5 = arith.constant 5 : index
    %33 = memref.load %arg2[%32, %c5] : memref<4x10xf32, #tpu.memory_space<smem>>
    %34 = vector.broadcast %33 : f32 to vector<1x16xf32>
    %35 = arith.mulf %34, %11 : vector<1x16xf32>
    %36 = vector.broadcast %29 : vector<1x16xf32> to vector<16x16xf32>
    %37 = arith.mulf %36, %20 : vector<16x16xf32>
    %38 = vector.broadcast %31 : f32 to vector<16x16xf32>
    %39 = arith.mulf %38, %1 : vector<16x16xf32>
    %40 = arith.addf %37, %39 : vector<16x16xf32>
    %41 = vector.broadcast %35 : vector<1x16xf32> to vector<16x16xf32>
    %42 = arith.mulf %41, %21 : vector<16x16xf32>
    %43 = arith.addf %40, %42 : vector<16x16xf32>
    %44 = arith.addf %25, %43 : vector<16x16xf32>
    %45 = arith.index_cast %arg1 : i32 to index
    %c0_6 = arith.constant 0 : index
    %46 = memref.load %arg2[%45, %c0_6] : memref<4x10xf32, #tpu.memory_space<smem>>
    %47 = vector.broadcast %46 : f32 to vector<1x16xf32>
    %48 = arith.mulf %47, %7 : vector<1x16xf32>
    %49 = arith.index_cast %arg1 : i32 to index
    %c1 = arith.constant 1 : index
    %50 = memref.load %arg2[%49, %c1] : memref<4x10xf32, #tpu.memory_space<smem>>
    %51 = arith.index_cast %arg1 : i32 to index
    %c2 = arith.constant 2 : index
    %52 = memref.load %arg2[%51, %c2] : memref<4x10xf32, #tpu.memory_space<smem>>
    %53 = vector.broadcast %52 : f32 to vector<1x16xf32>
    %54 = arith.mulf %53, %11 : vector<1x16xf32>
    %55 = vector.broadcast %48 : vector<1x16xf32> to vector<16x16xf32>
    %56 = arith.mulf %55, %20 : vector<16x16xf32>
    %57 = vector.broadcast %50 : f32 to vector<16x16xf32>
    %58 = arith.mulf %57, %1 : vector<16x16xf32>
    %59 = arith.addf %56, %58 : vector<16x16xf32>
    %60 = vector.broadcast %54 : vector<1x16xf32> to vector<16x16xf32>
    %61 = arith.mulf %60, %21 : vector<16x16xf32>
    %62 = arith.addf %59, %61 : vector<16x16xf32>
    %c1_i32_7 = arith.constant 1 : i32
    %63 = tpu.dynamic_rotate %62 by %c1_i32_7 dim 0 : vector<16x16xf32>, i32 -> vector<16x16xf32>
    %64 = vector.broadcast %15 : vector<16x1xf32> to vector<16x16xf32>
    %65 = arith.mulf %63, %64 : vector<16x16xf32>
    %66 = arith.addf %44, %65 : vector<16x16xf32>
    %67 = arith.index_cast %arg1 : i32 to index
    %c6 = arith.constant 6 : index
    %68 = memref.load %arg2[%67, %c6] : memref<4x10xf32, #tpu.memory_space<smem>>
    %69 = vector.broadcast %68 : f32 to vector<1x16xf32>
    %70 = arith.mulf %69, %7 : vector<1x16xf32>
    %71 = arith.index_cast %arg1 : i32 to index
    %c7 = arith.constant 7 : index
    %72 = memref.load %arg2[%71, %c7] : memref<4x10xf32, #tpu.memory_space<smem>>
    %73 = arith.index_cast %arg1 : i32 to index
    %c8 = arith.constant 8 : index
    %74 = memref.load %arg2[%73, %c8] : memref<4x10xf32, #tpu.memory_space<smem>>
    %75 = vector.broadcast %74 : f32 to vector<1x16xf32>
    %76 = arith.mulf %75, %11 : vector<1x16xf32>
    %77 = vector.broadcast %70 : vector<1x16xf32> to vector<16x16xf32>
    %78 = arith.mulf %77, %20 : vector<16x16xf32>
    %79 = vector.broadcast %72 : f32 to vector<16x16xf32>
    %80 = arith.mulf %79, %1 : vector<16x16xf32>
    %81 = arith.addf %78, %80 : vector<16x16xf32>
    %82 = vector.broadcast %76 : vector<1x16xf32> to vector<16x16xf32>
    %83 = arith.mulf %82, %21 : vector<16x16xf32>
    %84 = arith.addf %81, %83 : vector<16x16xf32>
    %c15_i32_8 = arith.constant 15 : i32
    %85 = tpu.dynamic_rotate %84 by %c15_i32_8 dim 0 : vector<16x16xf32>, i32 -> vector<16x16xf32>
    %86 = vector.broadcast %19 : vector<16x1xf32> to vector<16x16xf32>
    %87 = arith.mulf %85, %86 : vector<16x16xf32>
    %88 = arith.addf %66, %87 : vector<16x16xf32>
    %c0_9 = arith.constant 0 : index
    %c0_10 = arith.constant 0 : index
    %c0_11 = arith.constant 0 : index
    %c0_12 = arith.constant 0 : index
    %89 = vector.load %arg4[%c0_9, %c0_10, %c0_11, %c0_12] : memref<1x1x16x16xf32, #tpu.memory_space<vmem>>, vector<1x1x16x16xf32>
    %90 = vector.shape_cast %89 : vector<1x1x16x16xf32> to vector<16x16xf32>
    %91 = vector.shape_cast %88 : vector<16x16xf32> to vector<1x1x16x16xf32>
    tpu.vector_store %arg4[%c0_9, %c0_10, %c0_11, %c0_12], %91 {strides = array<i32>} : memref<1x1x16x16xf32, #tpu.memory_space<vmem>>, vector<1x1x16x16xf32>,
    return
  }
  func.func @transform_0(%arg0: i32, %arg1: i32) -> (i32, i32) {
    %c0_i32 = arith.constant 0 : i32
    %c0_i32_0 = arith.constant 0 : i32
    %c0_i32_1 = arith.constant 0 : i32
    return %c0_i32, %c0_i32_0 : i32, i32
  }
  func.func @transform_1(%arg0: i32, %arg1: i32) -> (i32, i32, i32, i32) {
    %c0_i32 = arith.constant 0 : i32
    %c0_i32_0 = arith.constant 0 : i32
    %c0_i32_1 = arith.constant 0 : i32
    return %arg0, %arg1, %c0_i32, %c0_i32_0 : i32, i32, i32, i32
  }
  func.func @transform_2(%arg0: i32, %arg1: i32) -> (i32, i32, i32, i32) {
    %c0_i32 = arith.constant 0 : i32
    %c0_i32_0 = arith.constant 0 : i32
    %c0_i32_1 = arith.constant 0 : i32
    return %arg0, %arg1, %c0_i32, %c0_i32_0 : i32, i32, i32, i32
  }
}

</mosaic_0001>

<llo_original>
// kernel: tpu_custom_call.1
$region0: #{tpu_custom_call.1}
  #allocation0 [shape = 'u32[]', space=smem, size = 0x4, offset = 0x4, fixed_abs, tag = 'smem constant byte address 0x4 - core index']
  #allocation1 [shape = 'u32[72,128]{1,0:T(1,128)}', space=vmem, size = 0x9000, scoped, tag = 'internal scratch']
  %s0 = inlined_call_operand.hbm [shape: f32[4,10], index: 0, kind: input, shape index: {}]
  %s1 = inlined_call_operand.hbm [shape: f32[2,4,16,16], index: 1, kind: input, shape index: {}]
  %s2 = inlined_call_operand.hbm [shape: f32[2,4,16,16], index: 2, kind: output, shape index: {}]
  %s3 = sld [smem:[#allocation0]]
  $region49: #{tpu_custom_call.1} parent=0
    _
  %s5 = ssub.s32 1, %s3
  %s6 = scalar_select 0, %s5, %s3
  $region1: #{tpu_custom_call.1} parent=0
    #allocation2 [shape = 'u8[2048]{0}', space=smem, size = 0x800, scoped, tag = 'input window, operand 0, single buffered']
    #allocation3 [shape = 's32[2]{0}', space=sflag, size = 0x8, scoped, tag = 'scoped memory for tpu_custom_call.1']
    #allocation4 [shape = 's32[2]{0}', space=sflag, size = 0x8, scoped, tag = 'scoped memory for tpu_custom_call.1']
    #allocation5 [shape = 's32[2]{0}', space=sflag, size = 0x8, scoped, tag = 'scoped memory for tpu_custom_call.1']
    #allocation6 [shape = 'u8[16384]{0}', space=vmem, size = 0x4000, scoped, tag = 'input window, operand 1']
    #allocation7 [shape = 'u8[16384]{0}', space=vmem, size = 0x4000, scoped, tag = 'output window, operand 0']
    %7 = vsyncpa [#allocation5], 0
    %8 = vsyncpa [#allocation3], 0
    %s9 = scalar_lea.sflag [#allocation3], 1
    %10 = vsyncpa %s9, 0
    %11 = vsyncpa [#allocation4], 0
    %s12 = scalar_lea.sflag [#allocation4], 1
    %13 = vsyncpa %s12, 0
    loop: start=0, step=1, limit=10
    $region2: #{tpu_custom_call.1} parent=1 // loop_pre_header
      _
    $region3: #{tpu_custom_call.1} parent=1 // loop_header
      %s15 = sphi 0, %s19
      %p16 = scmp.ge.s32.totalorder %s15, 10
      %s22 = sphi 0, %s34
      %s23 = sphi 0, %s30
      %s24 = sphi 0, %s22
      %s25 = sphi 0, %s23
      %s26 = sphi 0, %s24
      %s27 = sphi 0, %s25
      %s35 = sphi 0, %s35
      %s37 = sphi 0, %s35
      %s38 = sphi 0, %s37
      %s52 = sphi 0, %s38
      %s60 = sphi 0, %s62
      %s63 = sphi 0, %s60
      %s64 = sphi 0, %s63
      %s80 = sphi 0, %s64
      %s88 = sphi 0, %s90
      %s91 = sphi 0, %s88
      %s92 = sphi 0, %s91
      %s108 = sphi 0, %s92
    $region4: #{tpu_custom_call.1} parent=1 // loop_header_branch
      %18 = sbr.rel (%p16) target = $region8
    $region5: #{tpu_custom_call.1} parent=1 // loop_body
      %s20 = ssub.s32 %s15, 1
      %s21 = ssub.s32 %s15, 2
      %s28 = sadd.s32 1, %s23
      %p29 = scmp.ge.s32.totalorder %s28, 4
      %s30 = scalar_select %p29, 0, %s28
      %s31 = sadd.s32 1, %s22
      %s32 = scalar_select %p29, %s31, %s22
      %p33 = scmp.ge.s32.totalorder %s32, 2
      %s34 = scalar_select %p33, 0, %s32
      %s36 = sadd.s32 %s35, 1
      %p39 = scmp.eq.s32.totalorder %s15, 7
      %p40 = scmp.ne.s32.totalorder %s35, %s37
      %p41 = scmp.eq.s32.totalorder %s15, 0
      %p42 = por %p40, %p41
      %p43 = scmp.ne.s32.totalorder %s35, %s37
      %p44 = scmp.eq.s32.totalorder %s20, 7
      %p45 = por %p43, %p44
      %p46 = scmp.ne.s32.totalorder %s37, %s38
      %p47 = scmp.eq.s32.totalorder %s20, 0
      %p48 = por %p46, %p47
      %p49 = scmp.ne.s32.totalorder %s37, %s38
      %p50 = scmp.eq.s32.totalorder %s21, 7
      %p51 = por %p49, %p50
      %p53 = scmp.ne.s32.totalorder %s38, %s52
      %p54 = scmp.eq.s32.totalorder %s21, 0
      %p55 = por %p53, %p54
      %s56 = ssub.s32 %s22, %s34
      %s57 = ssub.s32 %s23, %s30
      %s58 = sor.u32 %s56, %s57
      %p59 = scmp.eq.s32.totalorder %s58, 0
      %s61 = sadd.s32 %s60, 1
      %s62 = scalar_select %p59, %s60, %s61
      %p65 = pneg %p59
      %p66 = scmp.eq.s32.totalorder %s15, 7
      %p67 = por %p65, %p66
      %p68 = scmp.ne.s32.totalorder %s60, %s63
      %p69 = scmp.eq.s32.totalorder %s15, 0
      %p70 = por %p68, %p69
      %p71 = scmp.ne.s32.totalorder %s60, %s63
      %p72 = scmp.eq.s32.totalorder %s20, 7
      %p73 = por %p71, %p72
      %p74 = scmp.ne.s32.totalorder %s63, %s64
      %p75 = scmp.eq.s32.totalorder %s20, 0
      %p76 = por %p74, %p75
      %p77 = scmp.ne.s32.totalorder %s63, %s64
      %p78 = scmp.eq.s32.totalorder %s21, 7
      %p79 = por %p77, %p78
      %p81 = scmp.ne.s32.totalorder %s64, %s80
      %p82 = scmp.eq.s32.totalorder %s21, 0
      %p83 = por %p81, %p82
      %s84 = ssub.s32 %s22, %s34
      %s85 = ssub.s32 %s23, %s30
      %s86 = sor.u32 %s84, %s85
      %p87 = scmp.eq.s32.totalorder %s86, 0
      %s89 = sadd.s32 %s88, 1
      %s90 = scalar_select %p87, %s88, %s89
      %p93 = pneg %p87
      %p94 = scmp.eq.s32.totalorder %s15, 7
      %p95 = por %p93, %p94
      %p96 = scmp.ne.s32.totalorder %s88, %s91
      %p97 = scmp.eq.s32.totalorder %s15, 0
      %p98 = por %p96, %p97
      %p99 = scmp.ne.s32.totalorder %s88, %s91
      %p100 = scmp.eq.s32.totalorder %s20, 7
      %p101 = por %p99, %p100
      %p102 = scmp.ne.s32.totalorder %s91, %s92
      %p103 = scmp.eq.s32.totalorder %s20, 0
      %p104 = por %p102, %p103
      %p105 = scmp.ne.s32.totalorder %s91, %s92
      %p106 = scmp.eq.s32.totalorder %s21, 7
      %p107 = por %p105, %p106
      %p109 = scmp.ne.s32.totalorder %s92, %s108
      %p110 = scmp.eq.s32.totalorder %s21, 0
      %p111 = por %p109, %p110
      %p112 = scmp.le.s32.totalorder 1, %s15
      %p113 = scmp.lt.s32.totalorder %s15, 9
      %p114 = pnand %p112, %p113
      %p115 = pneg %p114
      // Predicated region
      $region9: #{tpu_custom_call.1} parent=5 // pred_check
        _
      $region10: #{tpu_custom_call.1} parent=5 // pred_check_branch
        %117 = sbr.rel (%p114) target = $region12
      $region11: #{tpu_custom_call.1} parent=5 // pred_region
        %s118 = ssub.s32 %s15, 1
        // Predicated region
        $region13: #{tpu_custom_call.1} parent=11 // pred_check
          %p119 = pneg %p48
        $region14: #{tpu_custom_call.1} parent=11 // pred_check_branch
          %121 = sbr.rel (%p119) target = $region16
        $region15: #{tpu_custom_call.1} parent=11 // pred_region
          %123 = vsyncadd [#allocation5], 0
          %s125 = sshll.u32 %s0, 4
          %s126 = int_to_ptr.hbm [resolvable:$true] %s125
          %128 = dma.hbm_to_smem %s126, 64, [#allocation2], [#allocation5]
        $region16: #{tpu_custom_call.1} parent=11 // pred_fallthru
          _
      $region12: #{tpu_custom_call.1} parent=5 // pred_fallthru
        _
      %p129 = scmp.lt.s32.totalorder %s15, 8
      // Predicated region
      $region17: #{tpu_custom_call.1} parent=5 // pred_check
        %p130 = pneg %p129
      $region18: #{tpu_custom_call.1} parent=5 // pred_check_branch
        %132 = sbr.rel (%p130) target = $region20
      $region19: #{tpu_custom_call.1} parent=5 // pred_region
        // Predicated region
        $region21: #{tpu_custom_call.1} parent=19 // pred_check
          %p133 = pneg %p70
        $region22: #{tpu_custom_call.1} parent=19 // pred_check_branch
          %135 = sbr.rel (%p133) target = $region24
        $region23: #{tpu_custom_call.1} parent=19 // pred_region
          %s136 = sand.u32 %s60, 1
          %s137 = scalar_lea.sflag [#allocation3], %s136
          %s138 = sand.u32 %s60, 1
          %s139 = smul.addr %s138, 16
          %s140 = scalar_lea.vmem [#allocation6], %s139
          %142 = vsyncadd %s137, 0
          %s143 = smul.addr %s23, 2
          %s144 = smul.addr %s22, 8
          %s145 = sadd.s32 %s143, %s144
          %s146 = smul.addr %s145, 8
          %s147 = scalar_lea.hbm %s1, %s146
          %s148 = sshll.u32 %s147, 4
          %s149 = int_to_ptr.hbm [resolvable:$true] %s148
          %s150 = sshll.u32 %s140, 4
          %s151 = int_to_ptr.vmem [resolvable:$true] %s150
          %156 = dma.hbm_to_vmem [thread:$0]  %s149, 256, %s151, %s137, 128, 128, 8
        $region24: #{tpu_custom_call.1} parent=19 // pred_fallthru
          _
      $region20: #{tpu_custom_call.1} parent=5 // pred_fallthru
        _
      %p157 = scmp.le.s32.totalorder 1, %s15
      %p158 = scmp.lt.s32.totalorder %s15, 9
      %p159 = pnand %p157, %p158
      %p160 = pneg %p159
      // Predicated region
      $region25: #{tpu_custom_call.1} parent=5 // pred_check
        _
      $region26: #{tpu_custom_call.1} parent=5 // pred_check_branch
        %162 = sbr.rel (%p159) target = $region28
      $region27: #{tpu_custom_call.1} parent=5 // pred_region
        %s163 = ssub.s32 %s15, 1
        // Predicated region
        $region29: #{tpu_custom_call.1} parent=27 // pred_check
          %p164 = pneg %p48
        $region30: #{tpu_custom_call.1} parent=27 // pred_check_branch
          %166 = sbr.rel (%p164) target = $region32
        $region31: #{tpu_custom_call.1} parent=27 // pred_region
          %168 = dma.done [#allocation5], 64
        $region32: #{tpu_custom_call.1} parent=27 // pred_fallthru
          _
        %s169 = sand.u32 %s63, 1
        %s170 = scalar_lea.sflag [#allocation3], %s169
        %s171 = sand.u32 %s63, 1
        %s172 = smul.addr %s171, 16
        %s173 = scalar_lea.vmem [#allocation6], %s172
        // Predicated region
        $region33: #{tpu_custom_call.1} parent=27 // pred_check
          %p174 = pneg %p76
        $region34: #{tpu_custom_call.1} parent=27 // pred_check_branch
          %176 = sbr.rel (%p174) target = $region36
        $region35: #{tpu_custom_call.1} parent=27 // pred_region
          %178 = dma.done %s170, 256
        $region36: #{tpu_custom_call.1} parent=27 // pred_fallthru
          _
        %179 = sfence
        %p180 = pneg %p48
        %p181 = pneg %p45
        %s182 = sand.u32 %s63, 1
        %s183 = scalar_lea.sflag [#allocation3], %s182
        %s184 = sand.u32 %s63, 1
        %s185 = smul.addr %s184, 16
        %s186 = scalar_lea.vmem [#allocation6], %s185
        %p187 = pneg %p76
        %p188 = pneg %p73
        %p189 = pneg %p104
        %p190 = pneg %p101
        %s191 = sand.u32 %s91, 1
        %s192 = scalar_lea.sflag [#allocation4], %s191
        %s193 = sand.u32 %s91, 1
        %s194 = smul.addr %s193, 16
        %s195 = scalar_lea.vmem [#allocation7], %s194
        %v196 = vld [vmem:[%s173] sm:$0xff]
        %v197 = vld [vmem:[%s173 + $0x8] sm:$0xff]
        %v198 = vlaneseq
        %v199 = vand.u32 %v198, 127
        %v200 = vlaneseq
        %v201 = vshrl.u32 %v200, 7
        %v202 = vadd.s32 %v201, 8
        %vm203 = vcmp.ge.s32.totalorder %v199, 1
        %v204 = vsel %vm203, 1, 0
        %v205 = vcvt.s32.f32 %v204
        %vm206 = vcmp.le.s32.totalorder %v199, 14
        %v207 = vsel %vm206, 1, 0
        %v208 = vcvt.s32.f32 %v207
        %vm209 = vcmp.ge.s32.totalorder %v201, 1
        %vm210 = vcmp.ge.s32.totalorder %v202, 1
        %v211 = vsel %vm209, 1, 0
        %v212 = vsel %vm210, 1, 0
        %v213 = vcvt.s32.f32 %v211
        %v214 = vcvt.s32.f32 %v212
        %vm215 = vcmp.le.s32.totalorder %v201, 14
        %vm216 = vcmp.le.s32.totalorder %v202, 14
        %v217 = vsel %vm215, 1, 0
        %v218 = vsel %vm216, 1, 0
        %v219 = vcvt.s32.f32 %v217
        %v220 = vcvt.s32.f32 %v218
        %vm221 = vcmask 1047680
        %222 = vrot.lane.b32.xlu0 %v196, 16
        %v223 = vpop.permute.xlu0 %222
        %v224 = vsel %vm221, %v223, %v196
        %225 = vrot.lane.b32.xlu0 %v197, 16
        %v226 = vpop.permute.xlu0 %225
        %v227 = vsel %vm221, %v226, %v197
        %228 = vrot.lane.b32.xlu0 %v224, 16
        %v229 = vpop.permute.xlu0 %228
        %230 = vrot.lane.b32.xlu0 %v227, 16
        %v231 = vpop.permute.xlu0 %230
        %v232 = vsel %vm221, %v229, %v196
        %v233 = vsel %vm221, %v231, %v197
        %s234 = smul.u32 %s25, 128
        %s235 = sadd.s32 %s234, 9
        %s236 = sld [smem:[#allocation2 + %s235]]
        %v237 = vstv %s236
        %v238 = vadd.f32 %v196, %v237
        %v239 = vadd.f32 %v197, %v237
        %s240 = sadd.s32 %s234, 3
        %s241 = sld [smem:[#allocation2 + %s240]]
        %v242 = vstv %s241
        %v243 = vmul.f32 %v242, %v205
        %s244 = sadd.s32 %s234, 4
        %s245 = sld [smem:[#allocation2 + %s244]]
        %s246 = sadd.s32 %s234, 5
        %s247 = sld [smem:[#allocation2 + %s246]]
        %v248 = vstv %s247
        %v249 = vmul.f32 %v248, %v208
        %252 = vrot.lane.b32.xlu0 %v232, 113
        %v253 = vpop.permute.xlu0 %252
        %254 = vrot.lane.b32.xlu0 %v233, 113
        %v255 = vpop.permute.xlu0 %254
        %v258 = vmul.f32 %v243, %v253
        %v259 = vmul.f32 %v243, %v255
        %v260 = vstv %s245
        %v261 = vmul.f32 %v260, %v196
        %v262 = vmul.f32 %v260, %v197
        %v263 = vadd.f32 %v258, %v261
        %v264 = vadd.f32 %v259, %v262
        %265 = vrot.lane.b32.xlu0 %v232, 127
        %v266 = vpop.permute.xlu0 %265
        %267 = vrot.lane.b32.xlu0 %v233, 127
        %v268 = vpop.permute.xlu0 %267
        %v271 = vmul.f32 %v249, %v266
        %v272 = vmul.f32 %v249, %v268
        %v273 = vadd.f32 %v263, %v271
        %v274 = vadd.f32 %v264, %v272
        %v275 = vadd.f32 %v238, %v273
        %v276 = vadd.f32 %v239, %v274
        %s277 = sld [smem:[#allocation2 + %s234]]
        %v278 = vstv %s277
        %v279 = vmul.f32 %v278, %v205
        %s280 = sadd.s32 %s234, 1
        %s281 = sld [smem:[#allocation2 + %s280]]
        %s282 = sadd.s32 %s234, 2
        %s283 = sld [smem:[#allocation2 + %s282]]
        %v284 = vstv %s283
        %v285 = vmul.f32 %v284, %v208
        %v286 = vmul.f32 %v279, %v253
        %v287 = vmul.f32 %v279, %v255
        %v288 = vstv %s281
        %v289 = vmul.f32 %v288, %v196
        %v290 = vmul.f32 %v288, %v197
        %v291 = vadd.f32 %v286, %v289
        %v292 = vadd.f32 %v287, %v290
        %v293 = vmul.f32 %v285, %v266
        %v294 = vmul.f32 %v285, %v268
        %v295 = vadd.f32 %v291, %v293
        %v296 = vadd.f32 %v292, %v294
        %v297 = vrot.slane %v295, 7
        %v298 = vrot.slane %v296, 7
        %vm299 = vcmp.lt.s32.totalorder %v201, 1
        %v300 = vsel %vm299, %v297, %v298
        %v301 = vsel %vm299, %v298, %v297
        %v302 = vmul.f32 %v301, %v213
        %v303 = vmul.f32 %v300, %v214
        %v304 = vadd.f32 %v275, %v302
        %v305 = vadd.f32 %v276, %v303
        %s306 = sadd.s32 %s234, 6
        %s307 = sld [smem:[#allocation2 + %s306]]
        %v308 = vstv %s307
        %v309 = vmul.f32 %v308, %v205
        %s310 = sadd.s32 %s234, 7
        %s311 = sld [smem:[#allocation2 + %s310]]
        %s312 = sadd.s32 %s234, 8
        %s313 = sld [smem:[#allocation2 + %s312]]
        %v314 = vstv %s313
        %v315 = vmul.f32 %v314, %v208
        %v316 = vmul.f32 %v309, %v253
        %v317 = vmul.f32 %v309, %v255
        %v318 = vstv %s311
        %v319 = vmul.f32 %v318, %v196
        %v320 = vmul.f32 %v318, %v197
        %v321 = vadd.f32 %v316, %v319
        %v322 = vadd.f32 %v317, %v320
        %v323 = vmul.f32 %v315, %v266
        %v324 = vmul.f32 %v315, %v268
        %v325 = vadd.f32 %v321, %v323
        %v326 = vadd.f32 %v322, %v324
        %v327 = vrot.slane %v325, 1
        %v328 = vrot.slane %v326, 1
        %vm329 = vcmp.lt.s32.totalorder %v201, 7
        %v330 = vsel %vm329, %v327, %v328
        %v331 = vsel %vm329, %v328, %v327
        %v332 = vmul.f32 %v330, %v219
        %v333 = vmul.f32 %v331, %v220
        %v334 = vadd.f32 %v304, %v332
        %v335 = vadd.f32 %v305, %v333
        %vm336 = vcmask 130048
        %337 = vst.msk [vmem:[%s195] sm:$0xff] %vm336, %v334
        %338 = vst.msk [vmem:[%s195 + $0x8] sm:$0xff] %vm336, %v335
        %s339 = sand.u32 %s91, 1
        %s340 = scalar_lea.sflag [#allocation4], %s339
        %s341 = sand.u32 %s91, 1
        %s342 = smul.addr %s341, 16
        %s343 = scalar_lea.vmem [#allocation7], %s342
        // Predicated region
        $region37: #{tpu_custom_call.1} parent=27 // pred_check
          %p344 = pneg %p101
        $region38: #{tpu_custom_call.1} parent=27 // pred_check_branch
          %346 = sbr.rel (%p344) target = $region40
        $region39: #{tpu_custom_call.1} parent=27 // pred_region
          %348 = vsyncadd %s340, 0
          %s349 = smul.addr %s25, 2
          %s350 = smul.addr %s24, 8
          %s351 = sadd.s32 %s349, %s350
          %s352 = smul.addr %s351, 8
          %s353 = scalar_lea.hbm %s2, %s352
          %s354 = sshll.u32 %s343, 4
          %s355 = int_to_ptr.vmem [resolvable:$true] %s354
          %s356 = sshll.u32 %s353, 4
          %s357 = int_to_ptr.hbm [resolvable:$true] %s356
          %362 = dma.vmem_to_hbm [thread:$0]  %s355, 256, %s357, %s340, 128, 128, 8
        $region40: #{tpu_custom_call.1} parent=27 // pred_fallthru
          _
      $region28: #{tpu_custom_call.1} parent=5 // pred_fallthru
        _
      %p363 = scmp.le.s32.totalorder 2, %s15
      // Predicated region
      $region41: #{tpu_custom_call.1} parent=5 // pred_check
        %p364 = pneg %p363
      $region42: #{tpu_custom_call.1} parent=5 // pred_check_branch
        %366 = sbr.rel (%p364) target = $region44
      $region43: #{tpu_custom_call.1} parent=5 // pred_region
        %s367 = ssub.s32 %s15, 2
        // Predicated region
        $region45: #{tpu_custom_call.1} parent=43 // pred_check
          %p368 = pneg %p107
        $region46: #{tpu_custom_call.1} parent=43 // pred_check_branch
          %370 = sbr.rel (%p368) target = $region48
        $region47: #{tpu_custom_call.1} parent=43 // pred_region
          %s371 = sand.u32 %s92, 1
          %s372 = scalar_lea.sflag [#allocation4], %s371
          %s373 = sand.u32 %s92, 1
          %s374 = smul.addr %s373, 16
          %s375 = scalar_lea.vmem [#allocation7], %s374
          %377 = dma.done %s372, 256
        $region48: #{tpu_custom_call.1} parent=43 // pred_fallthru
          _
      $region44: #{tpu_custom_call.1} parent=5 // pred_fallthru
        _
    $region6: #{tpu_custom_call.1} parent=1 // loop_footer
      %s19 = sadd.s32 1, %s15
    $region7: #{tpu_custom_call.1} parent=1 // loop_footer_branch
      %14 = sbr.rel target = $region3
    $region8: #{tpu_custom_call.1} parent=1 // loop_exit
      _
    %378 = vsyncpa [#allocation3], 1
    %s379 = scalar_lea.sflag [#allocation3], 1
    %380 = vsyncpa %s379, 1
    %381 = vsyncpa [#allocation4], 1
    %s382 = scalar_lea.sflag [#allocation4], 1
    %383 = vsyncpa %s382, 1
    %384 = vsyncpa [#allocation5], 1
    %s385 = scalar_lea.sflag [#allocation5], 1
    %386 = vsyncpa %s385, 1

</llo_original>
